<compile_context>
chip_gen: v7x
topology: tpu7x:2x2x1
jax: 0.10.0
libtpu: 0.0.40
codegen_flags: <defaults>
</compile_context>

<pallas_src>
import jax
import jax.numpy as jnp
from jax.experimental import pallas as pl
from jax.experimental.pallas import tpu as pltpu


def mlp_kernel(x_ref, w1_ref, b1_ref, w2_ref, b2_ref, out_ref):
    # x_ref  : (TB, D)  streamed input tile (natural PyTorch layout)
    # w1_ref : (D, H)   layer-1 weights, VMEM-resident across grid steps
    # b1_ref : (1, H)   layer-1 bias
    # w2_ref : (1, H)   layer-2 weights (reshaped for lane broadcast)
    # b2_ref : (1, 1)   layer-2 bias (SMEM scalar)
    # out_ref: (TB, 1)  output tile
    h = jnp.dot(x_ref[...], w1_ref[...],
                preferred_element_type=jnp.float32) + b1_ref[...]
    h = jax.nn.sigmoid(h)                                    # (TB, H)

    # Second linear (K=4, N=1): VPU multiply + lane reduce, skip the MXU.
    o = jnp.sum(h * w2_ref[...], axis=-1, keepdims=True) + b2_ref[0, 0]
    out_ref[...] = jax.nn.sigmoid(o).astype(out_ref.dtype)   # (TB, 1)


def mlp_forward(x, w1, b1, w2, b2, *, block_b=8192):
    """Fused MLP forward: sigmoid(sigmoid(x @ w1 + b1) @ w2 + b2).

    x: (B, D) f32; w1: (D, H); b1: (1, H); w2: (H, 1); b2: (1, 1)
    (nn.Linear semantics with weights stored as (in_features, out_features)).
    Returns (B, 1) f32.

    block_b: batch rows per grid step.  For D=16 the default 8192 streams
    ~512 KiB HBM/step and uses ~24 MiB VMEM once the 16->128 lane padding and
    double buffering are counted; scale it down inversely with D if D grows.
    """
    B, D = x.shape
    H = w1.shape[1]

    # Second-to-last block dim must be a multiple of 8 (sublane) unless it
    # equals the full dim.  No host-side padding: a partial last block is
    # handled by Pallas (OOB reads undefined, OOB writes dropped) and rows
    # never mix inside the kernel.
    if B <= block_b:
        TB = B                              # single step; full-dim block is always legal
    else:
        TB = max(8, (block_b // 8) * 8)
    grid = (pl.cdiv(B, TB),)

    out = pl.pallas_call(
        mlp_kernel,
        out_shape=jax.ShapeDtypeStruct((B, 1), jnp.float32),
        grid=grid,
        in_specs=[
            pl.BlockSpec((TB, D), lambda i: (i, 0)),            # streamed x tile
            pl.BlockSpec((D, H), lambda i: (0, 0)),             # resident weights
            pl.BlockSpec((1, H), lambda i: (0, 0)),             # resident bias
            pl.BlockSpec((1, H), lambda i: (0, 0)),             # resident w2
            pl.BlockSpec(memory_space=pltpu.MemorySpace.SMEM),  # b2 scalar
        ],
        out_specs=pl.BlockSpec((TB, 1), lambda i: (i, 0)),
        compiler_params=pltpu.CompilerParams(
            dimension_semantics=("parallel",),      # megacore sharding on v7x
            vmem_limit_bytes=48 * 1024 * 1024,      # < v7x 64 MiB physical
        ),
        cost_estimate=pl.CostEstimate(
            flops=2 * B * H * (D + 1),
            transcendentals=B * (H + 1),
            bytes_accessed=4 * (B * D + B + D * H + 3 * H + 1),
        ),
    )(x, w1, b1.reshape(1, H), w2.reshape(1, H), b2.reshape(1, 1))
    return out


def init_params(key, input_size, hidden_size=4, output_size=1):
    """PyTorch-style init: U(-1/sqrt(fan_in), 1/sqrt(fan_in)).
    Weights stored as (in_features, out_features)."""
    k1, k2, k3, k4 = jax.random.split(key, 4)
    bound1 = 1.0 / jnp.sqrt(input_size)
    bound2 = 1.0 / jnp.sqrt(hidden_size)
    w1 = jax.random.uniform(k1, (input_size, hidden_size), jnp.float32,
                            minval=-bound1, maxval=bound1)
    b1 = jax.random.uniform(k2, (1, hidden_size), jnp.float32,
                            minval=-bound1, maxval=bound1)
    w2 = jax.random.uniform(k3, (hidden_size, output_size), jnp.float32,
                            minval=-bound2, maxval=bound2)
    b2 = jax.random.uniform(k4, (1, output_size), jnp.float32,
                            minval=-bound2, maxval=bound2)
    return w1, b1, w2, b2


if __name__ == "__main__":
    key = jax.random.PRNGKey(0)
    k_x, k_p = jax.random.split(key)

    # Small demo shapes; batch deliberately NOT a multiple of the block so the
    # partial-last-block (no host padding) path is exercised, and block_b small
    # enough to give a multi-step pipelined grid.
    batch, input_size = 300, 16
    x = jax.random.normal(k_x, (batch, input_size), jnp.float32)
    w1, b1, w2, b2 = init_params(k_p, input_size)

    out = mlp_forward(x, w1, b1, w2, b2, block_b=128)
    out = jax.block_until_ready(out)

    # Plain-JAX reference check.
    h_ref = jax.nn.sigmoid(x @ w1 + b1)
    o_ref = jax.nn.sigmoid(h_ref @ w2 + b2)
    assert out.shape == (batch, 1)
    assert jnp.allclose(out, o_ref, atol=1e-5), "mismatch vs reference"

    print("KERNEL_OK")
</pallas_src>

<mosaic_0001>
module attributes {stable_mosaic.version = 11 : i64} {
  func.func @mlp_kernel(%arg0: i32, %arg1: memref<128x16xf32, #tpu.memory_space<vmem>>, %arg2: memref<16x4xf32, #tpu.memory_space<vmem>>, %arg3: memref<1x4xf32, #tpu.memory_space<vmem>>, %arg4: memref<1x4xf32, #tpu.memory_space<vmem>>, %arg5: memref<1x1xf32, #tpu.memory_space<smem>>, %arg6: memref<128x1xf32, #tpu.memory_space<vmem>>) attributes {dimension_semantics = [#tpu.dimension_semantics<parallel>], iteration_bounds = array<i64: 3>, scalar_prefetch = 0 : i64, scratch_operands = 0 : i64, tpu.core_type = #tpu.core_type<tc>, window_params = [{transform_indices = @transform_0, window_bounds = array<i64: 128, 16>}, {pipeline_mode = #tpu.pipeline_mode<synchronous>, transform_indices = @transform_1, window_bounds = array<i64: 16, 4>}, {pipeline_mode = #tpu.pipeline_mode<synchronous>, transform_indices = @transform_2, window_bounds = array<i64: 1, 4>}, {pipeline_mode = #tpu.pipeline_mode<synchronous>, transform_indices = @transform_3, window_bounds = array<i64: 1, 4>}, {transform_indices = @transform_4, window_bounds = array<i64: 1, 1>}, {transform_indices = @transform_5, window_bounds = array<i64: 128, 1>}]} {
    %c0 = arith.constant 0 : index
    %c0_0 = arith.constant 0 : index
    %0 = vector.load %arg1[%c0, %c0_0] : memref<128x16xf32, #tpu.memory_space<vmem>>, vector<128x16xf32>
    %c0_1 = arith.constant 0 : index
    %c0_2 = arith.constant 0 : index
    %1 = vector.load %arg2[%c0_1, %c0_2] : memref<16x4xf32, #tpu.memory_space<vmem>>, vector<16x4xf32>
    %cst = arith.constant dense<0.000000e+00> : vector<128x4xf32>
    %2 = tpu.matmul %0, %1, %cst {dimension_numbers = #tpu.dot_dimension_numbers<[1], [0], [0], [1], [0, 0, 1, 1], [], []>} : vector<128x16xf32>, vector<16x4xf32>, vector<128x4xf32> -> vector<128x4xf32>
    %c0_3 = arith.constant 0 : index
    %c0_4 = arith.constant 0 : index
    %3 = vector.load %arg3[%c0_3, %c0_4] : memref<1x4xf32, #tpu.memory_space<vmem>>, vector<1x4xf32>
    %4 = vector.broadcast %3 : vector<1x4xf32> to vector<128x4xf32>
    %5 = arith.addf %2, %4 : vector<128x4xf32>
    %6 = arith.negf %5 : vector<128x4xf32>
    %7 = math.exp %6 : vector<128x4xf32>
    %cst_5 = arith.constant 1.000000e+00 : f32
    %8 = vector.broadcast %cst_5 : f32 to vector<128x4xf32>
    %9 = arith.addf %8, %7 : vector<128x4xf32>
    %10 = arith.divf %8, %9 : vector<128x4xf32>
    %c0_6 = arith.constant 0 : index
    %c0_7 = arith.constant 0 : index
    %11 = vector.load %arg4[%c0_6, %c0_7] : memref<1x4xf32, #tpu.memory_space<vmem>>, vector<1x4xf32>
    %12 = vector.broadcast %11 : vector<1x4xf32> to vector<128x4xf32>
    %13 = arith.mulf %10, %12 : vector<128x4xf32>
    %cst_8 = arith.constant dense<0.000000e+00> : vector<128xf32>
    %14 = vector.multi_reduction <add>, %13, %cst_8 [1] : vector<128x4xf32> to vector<128xf32>
    %15 = vector.shape_cast %14 : vector<128xf32> to vector<128x1xf32>
    %c0_9 = arith.constant 0 : index
    %c0_10 = arith.constant 0 : index
    %16 = memref.load %arg5[%c0_9, %c0_10] : memref<1x1xf32, #tpu.memory_space<smem>>
    %17 = vector.broadcast %16 : f32 to vector<128x1xf32>
    %18 = arith.addf %15, %17 : vector<128x1xf32>
    %19 = arith.negf %18 : vector<128x1xf32>
    %20 = math.exp %19 : vector<128x1xf32>
    %cst_11 = arith.constant 1.000000e+00 : f32
    %21 = vector.broadcast %cst_11 : f32 to vector<128x1xf32>
    %22 = arith.addf %21, %20 : vector<128x1xf32>
    %23 = arith.divf %21, %22 : vector<128x1xf32>
    %c0_12 = arith.constant 0 : index
    %c0_13 = arith.constant 0 : index
    %24 = vector.load %arg6[%c0_12, %c0_13] : memref<128x1xf32, #tpu.memory_space<vmem>>, vector<128x1xf32>
    tpu.vector_store %arg6[%c0_12, %c0_13], %23 {strides = array<i32>} : memref<128x1xf32, #tpu.memory_space<vmem>>, vector<128x1xf32>,
    return
  }
  func.func @transform_0(%arg0: i32) -> (i32, i32) {
    %c0_i32 = arith.constant 0 : i32
    %c0_i32_0 = arith.constant 0 : i32
    return %arg0, %c0_i32 : i32, i32
  }
  func.func @transform_1(%arg0: i32) -> (i32, i32) {
    %c0_i32 = arith.constant 0 : i32
    %c0_i32_0 = arith.constant 0 : i32
    %c0_i32_1 = arith.constant 0 : i32
    return %c0_i32, %c0_i32_0 : i32, i32
  }
  func.func @transform_2(%arg0: i32) -> (i32, i32) {
    %c0_i32 = arith.constant 0 : i32
    %c0_i32_0 = arith.constant 0 : i32
    %c0_i32_1 = arith.constant 0 : i32
    return %c0_i32, %c0_i32_0 : i32, i32
  }
  func.func @transform_3(%arg0: i32) -> (i32, i32) {
    %c0_i32 = arith.constant 0 : i32
    %c0_i32_0 = arith.constant 0 : i32
    %c0_i32_1 = arith.constant 0 : i32
    return %c0_i32, %c0_i32_0 : i32, i32
  }
  func.func @transform_4(%arg0: i32) -> (i32, i32) {
    %c0_i32 = arith.constant 0 : i32
    %c0_i32_0 = arith.constant 0 : i32
    %c0_i32_1 = arith.constant 0 : i32
    return %c0_i32, %c0_i32_0 : i32, i32
  }
  func.func @transform_5(%arg0: i32) -> (i32, i32) {
    %c0_i32 = arith.constant 0 : i32
    %c0_i32_0 = arith.constant 0 : i32
    return %arg0, %c0_i32 : i32, i32
  }
}

</mosaic_0001>

<llo_original>
// kernel: tpu_custom_call.1
$region0: #{tpu_custom_call.1}
  #allocation0 [shape = 'u32[]', space=smem, size = 0x4, offset = 0x4, fixed_abs, tag = 'smem constant byte address 0x4 - core index']
  #allocation1 [shape = 'u32[144,128]{1,0:T(1,128)}', space=vmem, size = 0x12000, scoped, tag = 'internal scratch']
  #allocation2 [shape = 'f32[1,1]{1,0:T(1,128)S(6)}', space=smem, size = 0x200, scoped, tag = 'scoped memory for tpu_custom_call.1']
  %s0 = inlined_call_operand.vmem [shape: f32[300,16], index: 0, kind: input, shape index: {}]
  %s1 = inlined_call_operand.vmem [shape: f32[16,4], index: 1, kind: input, shape index: {}]
  %s2 = inlined_call_operand.vmem [shape: f32[1,4], index: 2, kind: input, shape index: {}]
  %s3 = inlined_call_operand.vmem [shape: f32[1,4], index: 3, kind: input, shape index: {}]
  %s4 = inlined_call_operand.<no memory space> [shape: f32[1,1], index: 4, kind: input, shape index: {}]
  %s5 = inlined_call_operand.vmem [shape: f32[300,1], index: 5, kind: output, shape index: {}]
  %s6 = sld [smem:[#allocation0]]
  $region101: #{tpu_custom_call.1} parent=0
    _
  %s8 = ssub.s32 1, %s6
  %s9 = scalar_select 0, %s8, %s6
  %10 = sst [smem:[#allocation2]] %s4
  $region1: #{tpu_custom_call.1} parent=0
    #allocation3 [shape = 'u8[131072]{0}', space=vmem, size = 0x20000, scoped, tag = 'output window, operand 0']
    loop: start=0, step=1, limit=5
    $region2: #{tpu_custom_call.1} parent=1 // loop_pre_header
      _
    $region3: #{tpu_custom_call.1} parent=1 // loop_header
      %s12 = sphi 0, %s16
      %p13 = scmp.ge.s32.totalorder %s12, 5
      %s22 = sphi 0, %s24
      %s25 = sphi 0, %s22
      %s26 = sphi 0, %s25
      %s42 = sphi 0, %s26
      %s46 = sphi 0, %s46
      %s48 = sphi 0, %s46
      %s49 = sphi 0, %s48
      %s63 = sphi 0, %s49
      %s67 = sphi 0, %s67
      %s69 = sphi 0, %s67
      %s70 = sphi 0, %s69
      %s84 = sphi 0, %s70
      %s88 = sphi 0, %s88
      %s90 = sphi 0, %s88
      %s91 = sphi 0, %s90
      %s105 = sphi 0, %s91
      %s109 = sphi 0, %s109
      %s111 = sphi 0, %s109
      %s112 = sphi 0, %s111
      %s126 = sphi 0, %s112
      %s132 = sphi 0, %s134
      %s135 = sphi 0, %s132
      %s136 = sphi 0, %s135
      %s152 = sphi 0, %s136
    $region4: #{tpu_custom_call.1} parent=1 // loop_header_branch
      %15 = sbr.rel (%p13) target = $region8
    $region5: #{tpu_custom_call.1} parent=1 // loop_body
      %s17 = ssub.s32 %s12, 1
      %s18 = ssub.s32 %s12, 2
      %s19 = sadd.s32 %s12, 1
      %s20 = ssub.s32 %s12, %s19
      %p21 = scmp.eq.s32.totalorder %s20, 0
      %s23 = sadd.s32 %s22, 1
      %s24 = scalar_select %p21, %s22, %s23
      %p27 = pneg %p21
      %p28 = scmp.eq.s32.totalorder %s12, 2
      %p29 = por %p27, %p28
      %p30 = scmp.ne.s32.totalorder %s22, %s25
      %p31 = scmp.eq.s32.totalorder %s12, 0
      %p32 = por %p30, %p31
      %p33 = scmp.ne.s32.totalorder %s22, %s25
      %p34 = scmp.eq.s32.totalorder %s17, 2
      %p35 = por %p33, %p34
      %p36 = scmp.ne.s32.totalorder %s25, %s26
      %p37 = scmp.eq.s32.totalorder %s17, 0
      %p38 = por %p36, %p37
      %p39 = scmp.ne.s32.totalorder %s25, %s26
      %p40 = scmp.eq.s32.totalorder %s18, 2
      %p41 = por %p39, %p40
      %p43 = scmp.ne.s32.totalorder %s26, %s42
      %p44 = scmp.eq.s32.totalorder %s18, 0
      %p45 = por %p43, %p44
      %s47 = sadd.s32 %s46, 1
      %p50 = scmp.eq.s32.totalorder %s12, 2
      %p51 = scmp.ne.s32.totalorder %s46, %s48
      %p52 = scmp.eq.s32.totalorder %s12, 0
      %p53 = por %p51, %p52
      %p54 = scmp.ne.s32.totalorder %s46, %s48
      %p55 = scmp.eq.s32.totalorder %s17, 2
      %p56 = por %p54, %p55
      %p57 = scmp.ne.s32.totalorder %s48, %s49
      %p58 = scmp.eq.s32.totalorder %s17, 0
      %p59 = por %p57, %p58
      %p60 = scmp.ne.s32.totalorder %s48, %s49
      %p61 = scmp.eq.s32.totalorder %s18, 2
      %p62 = por %p60, %p61
      %p64 = scmp.ne.s32.totalorder %s49, %s63
      %p65 = scmp.eq.s32.totalorder %s18, 0
      %p66 = por %p64, %p65
      %s68 = sadd.s32 %s67, 1
      %p71 = scmp.eq.s32.totalorder %s12, 2
      %p72 = scmp.ne.s32.totalorder %s67, %s69
      %p73 = scmp.eq.s32.totalorder %s12, 0
      %p74 = por %p72, %p73
      %p75 = scmp.ne.s32.totalorder %s67, %s69
      %p76 = scmp.eq.s32.totalorder %s17, 2
      %p77 = por %p75, %p76
      %p78 = scmp.ne.s32.totalorder %s69, %s70
      %p79 = scmp.eq.s32.totalorder %s17, 0
      %p80 = por %p78, %p79
      %p81 = scmp.ne.s32.totalorder %s69, %s70
      %p82 = scmp.eq.s32.totalorder %s18, 2
      %p83 = por %p81, %p82
      %p85 = scmp.ne.s32.totalorder %s70, %s84
      %p86 = scmp.eq.s32.totalorder %s18, 0
      %p87 = por %p85, %p86
      %s89 = sadd.s32 %s88, 1
      %p92 = scmp.eq.s32.totalorder %s12, 2
      %p93 = scmp.ne.s32.totalorder %s88, %s90
      %p94 = scmp.eq.s32.totalorder %s12, 0
      %p95 = por %p93, %p94
      %p96 = scmp.ne.s32.totalorder %s88, %s90
      %p97 = scmp.eq.s32.totalorder %s17, 2
      %p98 = por %p96, %p97
      %p99 = scmp.ne.s32.totalorder %s90, %s91
      %p100 = scmp.eq.s32.totalorder %s17, 0
      %p101 = por %p99, %p100
      %p102 = scmp.ne.s32.totalorder %s90, %s91
      %p103 = scmp.eq.s32.totalorder %s18, 2
      %p104 = por %p102, %p103
      %p106 = scmp.ne.s32.totalorder %s91, %s105
      %p107 = scmp.eq.s32.totalorder %s18, 0
      %p108 = por %p106, %p107
      %s110 = sadd.s32 %s109, 1
      %p113 = scmp.eq.s32.totalorder %s12, 2
      %p114 = scmp.ne.s32.totalorder %s109, %s111
      %p115 = scmp.eq.s32.totalorder %s12, 0
      %p116 = por %p114, %p115
      %p117 = scmp.ne.s32.totalorder %s109, %s111
      %p118 = scmp.eq.s32.totalorder %s17, 2
      %p119 = por %p117, %p118
      %p120 = scmp.ne.s32.totalorder %s111, %s112
      %p121 = scmp.eq.s32.totalorder %s17, 0
      %p122 = por %p120, %p121
      %p123 = scmp.ne.s32.totalorder %s111, %s112
      %p124 = scmp.eq.s32.totalorder %s18, 2
      %p125 = por %p123, %p124
      %p127 = scmp.ne.s32.totalorder %s112, %s126
      %p128 = scmp.eq.s32.totalorder %s18, 0
      %p129 = por %p127, %p128
      %s130 = ssub.s32 %s12, %s19
      %p131 = scmp.eq.s32.totalorder %s130, 0
      %s133 = sadd.s32 %s132, 1
      %s134 = scalar_select %p131, %s132, %s133
      %p137 = pneg %p131
      %p138 = scmp.eq.s32.totalorder %s12, 2
      %p139 = por %p137, %p138
      %p140 = scmp.ne.s32.totalorder %s132, %s135
      %p141 = scmp.eq.s32.totalorder %s12, 0
      %p142 = por %p140, %p141
      %p143 = scmp.ne.s32.totalorder %s132, %s135
      %p144 = scmp.eq.s32.totalorder %s17, 2
      %p145 = por %p143, %p144
      %p146 = scmp.ne.s32.totalorder %s135, %s136
      %p147 = scmp.eq.s32.totalorder %s17, 0
      %p148 = por %p146, %p147
      %p149 = scmp.ne.s32.totalorder %s135, %s136
      %p150 = scmp.eq.s32.totalorder %s18, 2
      %p151 = por %p149, %p150
      %p153 = scmp.ne.s32.totalorder %s136, %s152
      %p154 = scmp.eq.s32.totalorder %s18, 0
      %p155 = por %p153, %p154
      %p156 = scmp.le.s32.totalorder 1, %s12
      %p157 = scmp.lt.s32.totalorder %s12, 4
      %p158 = pnand %p156, %p157
      %p159 = pneg %p158
      // Predicated region
      $region9: #{tpu_custom_call.1} parent=5 // pred_check
        _
      $region10: #{tpu_custom_call.1} parent=5 // pred_check_branch
        %161 = sbr.rel (%p158) target = $region12
      $region11: #{tpu_custom_call.1} parent=5 // pred_region
        %s162 = ssub.s32 %s12, 1
        // Predicated region
        $region13: #{tpu_custom_call.1} parent=11 // pred_check
          %p163 = pneg %p59
        $region14: #{tpu_custom_call.1} parent=11 // pred_check_branch
          %165 = sbr.rel (%p163) target = $region16
        $region15: #{tpu_custom_call.1} parent=11 // pred_region
          _
        $region16: #{tpu_custom_call.1} parent=11 // pred_fallthru
          _
        // Predicated region
        $region17: #{tpu_custom_call.1} parent=11 // pred_check
          %p166 = pneg %p80
        $region18: #{tpu_custom_call.1} parent=11 // pred_check_branch
          %168 = sbr.rel (%p166) target = $region20
        $region19: #{tpu_custom_call.1} parent=11 // pred_region
          _
        $region20: #{tpu_custom_call.1} parent=11 // pred_fallthru
          _
        // Predicated region
        $region21: #{tpu_custom_call.1} parent=11 // pred_check
          %p169 = pneg %p101
        $region22: #{tpu_custom_call.1} parent=11 // pred_check_branch
          %171 = sbr.rel (%p169) target = $region24
        $region23: #{tpu_custom_call.1} parent=11 // pred_region
          _
        $region24: #{tpu_custom_call.1} parent=11 // pred_fallthru
          _
        // Predicated region
        $region25: #{tpu_custom_call.1} parent=11 // pred_check
          %p172 = pneg %p122
        $region26: #{tpu_custom_call.1} parent=11 // pred_check_branch
          %174 = sbr.rel (%p172) target = $region28
        $region27: #{tpu_custom_call.1} parent=11 // pred_region
          _
        $region28: #{tpu_custom_call.1} parent=11 // pred_fallthru
          _
      $region12: #{tpu_custom_call.1} parent=5 // pred_fallthru
        _
      %p175 = scmp.lt.s32.totalorder %s12, 3
      // Predicated region
      $region29: #{tpu_custom_call.1} parent=5 // pred_check
        %p176 = pneg %p175
      $region30: #{tpu_custom_call.1} parent=5 // pred_check_branch
        %178 = sbr.rel (%p176) target = $region32
      $region31: #{tpu_custom_call.1} parent=5 // pred_region
        // Predicated region
        $region33: #{tpu_custom_call.1} parent=31 // pred_check
          %p179 = pneg %p32
        $region34: #{tpu_custom_call.1} parent=31 // pred_check_branch
          %181 = sbr.rel (%p179) target = $region36
        $region35: #{tpu_custom_call.1} parent=31 // pred_region
          %s182 = smul.u32 16, %s12
          %s183 = ssub.s32 38, %s182
          %p184 = scmp.lt.s32.totalorder %s183, 16
          %s185 = scalar_select %p184, %s183, 16
          %s186 = smul.u32 128, %s185
          %p187 = scmp.lt.s32.totalorder %s182, 37
          %s188 = scalar_select %p187, %s182, 37
          %s189 = smul.addr %s188, 8
          %s190 = scalar_lea.vmem %s0, %s189
          %s191 = smul.u32 16, %s12
          %s192 = ssub.s32 38, %s191
          %p193 = scmp.lt.s32.totalorder %s192, 16
          %s194 = scalar_select %p193, %s192, 16
          %s195 = smul.u32 128, %s194
        $region36: #{tpu_custom_call.1} parent=31 // pred_fallthru
          _
      $region32: #{tpu_custom_call.1} parent=5 // pred_fallthru
        _
      %p196 = scmp.le.s32.totalorder 1, %s12
      %p197 = scmp.lt.s32.totalorder %s12, 4
      %p198 = pnand %p196, %p197
      %p199 = pneg %p198
      // Predicated region
      $region37: #{tpu_custom_call.1} parent=5 // pred_check
        _
      $region38: #{tpu_custom_call.1} parent=5 // pred_check_branch
        %201 = sbr.rel (%p198) target = $region40
      $region39: #{tpu_custom_call.1} parent=5 // pred_region
        %s202 = ssub.s32 %s12, 1
        %s203 = smul.u32 16, %s17
        %s204 = ssub.s32 38, %s203
        %p205 = scmp.lt.s32.totalorder %s204, 16
        %s206 = scalar_select %p205, %s204, 16
        %s207 = smul.u32 128, %s206
        %p208 = scmp.lt.s32.totalorder %s203, 37
        %s209 = scalar_select %p208, %s203, 37
        %s210 = smul.addr %s209, 8
        %s211 = scalar_lea.vmem %s0, %s210
        %p212 = pneg %p38
        %p213 = pneg %p35
        %p214 = pneg %p59
        %p215 = pneg %p56
        %p216 = pneg %p80
        %p217 = pneg %p77
        %p218 = pneg %p101
        %p219 = pneg %p98
        %p220 = pneg %p122
        %p221 = pneg %p119
        %p222 = pneg %p148
        %p223 = pneg %p145
        %s224 = sand.u32 %s135, 1
        %s225 = sand.u32 %s135, 1
        %s226 = smul.addr %s225, 128
        %s227 = scalar_lea.vmem [#allocation3], %s226
        %s228 = smul.u32 16, %s17
        %s229 = ssub.s32 38, %s228
        %p230 = scmp.lt.s32.totalorder %s229, 16
        %s231 = scalar_select %p230, %s229, 16
        %s232 = smul.u32 128, %s231
        %p233 = scmp.lt.s32.totalorder %s228, 37
        %s234 = scalar_select %p233, %s228, 37
        %s235 = smul.addr %s234, 8
        %s236 = scalar_lea.vmem %s0, %s235
        %s237 = smul.u32 16, %s17
        %s238 = ssub.s32 38, %s237
        %p239 = scmp.lt.s32.totalorder %s238, 16
        %s240 = scalar_select %p239, %s238, 16
        %s241 = smul.u32 128, %s240
        %s242 = smul.u32 16, %s17
        %s243 = ssub.s32 38, %s242
        %p244 = scmp.lt.s32.totalorder %s243, 16
        %s245 = scalar_select %p244, %s243, 16
        %s246 = smul.u32 128, %s245
        %v247 = vld [vmem:[%s236] sm:$0xff]
        %v248 = vld [vmem:[%s236 + $0x8] sm:$0xff]
        %v249 = vld [vmem:[%s236 + $0x10] sm:$0xff]
        %v250 = vld [vmem:[%s236 + $0x18] sm:$0xff]
        %v251 = vld [vmem:[%s236 + $0x20] sm:$0xff]
        %v252 = vld [vmem:[%s236 + $0x28] sm:$0xff]
        %v253 = vld [vmem:[%s236 + $0x30] sm:$0xff]
        %v254 = vld [vmem:[%s236 + $0x38] sm:$0xff]
        %v255 = vld [vmem:[%s236 + $0x40] sm:$0xff]
        %v256 = vld [vmem:[%s236 + $0x48] sm:$0xff]
        %v257 = vld [vmem:[%s236 + $0x50] sm:$0xff]
        %v258 = vld [vmem:[%s236 + $0x58] sm:$0xff]
        %v259 = vld [vmem:[%s236 + $0x60] sm:$0xff]
        %v260 = vld [vmem:[%s236 + $0x68] sm:$0xff]
        %v261 = vld [vmem:[%s236 + $0x70] sm:$0xff]
        %v262 = vld [vmem:[%s236 + $0x78] sm:$0xff]
        %v263 = vld [vmem:[%s1] sm:$0xff]
        %v264 = vld [vmem:[%s1 + $0x8] sm:$0xff]
        %v265 = vld [vmem:[%s2] sm:$0x1]
        %v267 = vlaneseq
        %v268 = vshrl.u32 %v267, 7
        %v269 = vsub.s32 0, %v268
        %v270 = vrot.slane %v265, %v269
        %vm272 = vcmask 130048
        %v274 = vsel %vm272, %v247, 0
        %v277 = vsel %vm272, %v248, 0
        %v280 = vsel %vm272, %v249, 0
        %v283 = vsel %vm272, %v250, 0
        %v286 = vsel %vm272, %v251, 0
        %v289 = vsel %vm272, %v252, 0
        %v292 = vsel %vm272, %v253, 0
        %v295 = vsel %vm272, %v254, 0
        %v298 = vsel %vm272, %v255, 0
        %v301 = vsel %vm272, %v256, 0
        %v304 = vsel %vm272, %v257, 0
        %v307 = vsel %vm272, %v258, 0
        %v310 = vsel %vm272, %v259, 0
        %v313 = vsel %vm272, %v260, 0
        %v316 = vsel %vm272, %v261, 0
        %v319 = vsel %vm272, %v262, 0
        %321 = vmatprep.subr.mxu0 0.0
        %322 = vmatpush1.msra.mxu0 %v263
        %323 = vmatprep.subr.mxu0 0.0
        %324 = vmatpush1.msra.mxu0 %v264
        %325 = vmatprep.subr.mxu0 0.0
        %326 = vmatpush1.msra.mxu0 0.0
        %327 = vmatprep.subr.mxu0 0.0
        %328 = vmatpush1.msra.mxu0 0.0
        %329 = vmatprep.subr.mxu0 0.0
        %330 = vmatpush1.msra.mxu0 0.0
        %331 = vmatprep.subr.mxu0 0.0
        %332 = vmatpush1.msra.mxu0 0.0
        %333 = vmatprep.subr.mxu0 0.0
        %334 = vmatpush1.msra.mxu0 0.0
        %335 = vmatprep.subr.mxu0 0.0
        %336 = vmatpush1.msra.mxu0 0.0
        %337 = vmatprep.subr.mxu0 0.0
        %338 = vmatpush1.msra.mxu0 0.0
        %339 = vmatprep.subr.mxu0 0.0
        %340 = vmatpush1.msra.mxu0 0.0
        %341 = vmatprep.subr.mxu0 0.0
        %342 = vmatpush1.msra.mxu0 0.0
        %343 = vmatprep.subr.mxu0 0.0
        %344 = vmatpush1.msra.mxu0 0.0
        %345 = vmatprep.subr.mxu0 0.0
        %346 = vmatpush1.msra.mxu0 0.0
        %347 = vmatprep.subr.mxu0 0.0
        %348 = vmatpush1.msra.mxu0 0.0
        %349 = vmatprep.subr.mxu0 0.0
        %350 = vmatpush1.msra.mxu0 0.0
        %351 = vmatprep.subr.mxu0 0.0
        %352 = vmatpush1.msra.mxu0 0.0
        %353 = vmatprep.subr.mxu0 0.0
        %354 = vmatpush1.msra.mxu0 0.0
        %355 = vmatprep.subr.mxu0 0.0
        %356 = vmatpush1.msra.mxu0 0.0
        %357 = vmatprep.subr.mxu0 0.0
        %358 = vmatpush1.msra.mxu0 0.0
        %359 = vmatprep.subr.mxu0 0.0
        %360 = vmatpush1.msra.mxu0 0.0
        %361 = vmatprep.subr.mxu0 0.0
        %362 = vmatpush1.msra.mxu0 0.0
        %363 = vmatprep.subr.mxu0 0.0
        %364 = vmatpush1.msra.mxu0 0.0
        %365 = vmatprep.subr.mxu0 0.0
        %366 = vmatpush1.msra.mxu0 0.0
        %367 = vmatprep.subr.mxu0 0.0
        %368 = vmatpush1.msra.mxu0 0.0
        %369 = vmatprep.subr.mxu0 0.0
        %370 = vmatpush1.msra.mxu0 0.0
        %371 = vmatprep.subr.mxu0 0.0
        %372 = vmatpush1.msra.mxu0 0.0
        %373 = vmatprep.subr.mxu0 0.0
        %374 = vmatpush1.msra.mxu0 0.0
        %375 = vmatprep.subr.mxu0 0.0
        %376 = vmatpush1.msra.mxu0 0.0
        %377 = vmatprep.subr.mxu0 0.0
        %378 = vmatpush1.msra.mxu0 0.0
        %379 = vmatprep.subr.mxu0 0.0
        %380 = vmatpush1.msra.mxu0 0.0
        %381 = vmatprep.subr.mxu0 0.0
        %382 = vmatpush1.msra.mxu0 0.0
        %383 = vmatprep.subr.mxu0 0.0
        %384 = vmatpush1.msra.mxu0 0.0
        %385 = vmatprep.mubr.f32.mxu0 0.0
        %386 = vmatmul.mubr.f32.gmra.mrb[0].mxu0 %v274
        %v387 = vpop.f32.mrb[0].mxu0
        %v388 = vadd.f32 %v270, %v387
        %v389 = vpop.f32.mrb[0].mxu0
        %390 = vmatprep.mubr.f32.mxu0 0.0
        %391 = vmatmul.mubr.f32.gmra.mrb[0].mxu0 %v277
        %v392 = vpop.f32.mrb[0].mxu0
        %v393 = vadd.f32 %v270, %v392
        %v394 = vpop.f32.mrb[0].mxu0
        %395 = vmatprep.mubr.f32.mxu0 0.0
        %396 = vmatmul.mubr.f32.gmra.mrb[0].mxu0 %v280
        %v397 = vpop.f32.mrb[0].mxu0
        %v398 = vadd.f32 %v270, %v397
        %v399 = vpop.f32.mrb[0].mxu0
        %400 = vmatprep.mubr.f32.mxu0 0.0
        %401 = vmatmul.mubr.f32.gmra.mrb[0].mxu0 %v283
        %v402 = vpop.f32.mrb[0].mxu0
        %v403 = vadd.f32 %v270, %v402
        %v404 = vpop.f32.mrb[0].mxu0
        %405 = vmatprep.mubr.f32.mxu0 0.0
        %406 = vmatmul.mubr.f32.gmra.mrb[0].mxu0 %v286
        %v407 = vpop.f32.mrb[0].mxu0
        %v408 = vadd.f32 %v270, %v407
        %v409 = vpop.f32.mrb[0].mxu0
        %410 = vmatprep.mubr.f32.mxu0 0.0
        %411 = vmatmul.mubr.f32.gmra.mrb[0].mxu0 %v289
        %v412 = vpop.f32.mrb[0].mxu0
        %v413 = vadd.f32 %v270, %v412
        %v414 = vpop.f32.mrb[0].mxu0
        %415 = vmatprep.mubr.f32.mxu0 0.0
        %416 = vmatmul.mubr.f32.gmra.mrb[0].mxu0 %v292
        %v417 = vpop.f32.mrb[0].mxu0
        %v418 = vadd.f32 %v270, %v417
        %v419 = vpop.f32.mrb[0].mxu0
        %420 = vmatprep.mubr.f32.mxu0 0.0
        %421 = vmatmul.mubr.f32.gmra.mrb[0].mxu0 %v295
        %v422 = vpop.f32.mrb[0].mxu0
        %v423 = vadd.f32 %v270, %v422
        %v424 = vpop.f32.mrb[0].mxu0
        %425 = vmatprep.mubr.f32.mxu0 0.0
        %426 = vmatmul.mubr.f32.gmra.mrb[0].mxu0 %v298
        %v427 = vpop.f32.mrb[0].mxu0
        %v428 = vadd.f32 %v270, %v427
        %v429 = vpop.f32.mrb[0].mxu0
        %430 = vmatprep.mubr.f32.mxu0 0.0
        %431 = vmatmul.mubr.f32.gmra.mrb[0].mxu0 %v301
        %v432 = vpop.f32.mrb[0].mxu0
        %v433 = vadd.f32 %v270, %v432
        %v434 = vpop.f32.mrb[0].mxu0
        %435 = vmatprep.mubr.f32.mxu0 0.0
        %436 = vmatmul.mubr.f32.gmra.mrb[0].mxu0 %v304
        %v437 = vpop.f32.mrb[0].mxu0
        %v438 = vadd.f32 %v270, %v437
        %v439 = vpop.f32.mrb[0].mxu0
        %440 = vmatprep.mubr.f32.mxu0 0.0
        %441 = vmatmul.mubr.f32.gmra.mrb[0].mxu0 %v307
        %v442 = vpop.f32.mrb[0].mxu0
        %v443 = vadd.f32 %v270, %v442
        %v444 = vpop.f32.mrb[0].mxu0
        %445 = vmatprep.mubr.f32.mxu0 0.0
        %446 = vmatmul.mubr.f32.gmra.mrb[0].mxu0 %v310
        %v447 = vpop.f32.mrb[0].mxu0
        %v448 = vadd.f32 %v270, %v447
        %v449 = vpop.f32.mrb[0].mxu0
        %450 = vmatprep.mubr.f32.mxu0 0.0
        %451 = vmatmul.mubr.f32.gmra.mrb[0].mxu0 %v313
        %v452 = vpop.f32.mrb[0].mxu0
        %v453 = vadd.f32 %v270, %v452
        %v454 = vpop.f32.mrb[0].mxu0
        %455 = vmatprep.mubr.f32.mxu0 0.0
        %456 = vmatmul.mubr.f32.gmra.mrb[0].mxu0 %v316
        %v457 = vpop.f32.mrb[0].mxu0
        %v458 = vadd.f32 %v270, %v457
        %v459 = vpop.f32.mrb[0].mxu0
        %460 = vmatprep.mubr.f32.mxu0 0.0
        %461 = vmatmul.mubr.f32.gmra.mrb[0].mxu0 %v319
        %v462 = vpop.f32.mrb[0].mxu0
        %v463 = vadd.f32 %v270, %v462
        %v464 = vpop.f32.mrb[0].mxu0
        %465 = vdwg.mxu0
        %v466 = vxor.u32 %v388, 2147483648
        %v467 = vxor.u32 %v393, 2147483648
        %v468 = vxor.u32 %v398, 2147483648
        %v469 = vxor.u32 %v403, 2147483648
        %v470 = vxor.u32 %v408, 2147483648
        %v471 = vxor.u32 %v413, 2147483648
        %v472 = vxor.u32 %v418, 2147483648
        %v473 = vxor.u32 %v423, 2147483648
        %v474 = vxor.u32 %v428, 2147483648
        %v475 = vxor.u32 %v433, 2147483648
        %v476 = vxor.u32 %v438, 2147483648
        %v477 = vxor.u32 %v443, 2147483648
        %v478 = vxor.u32 %v448, 2147483648
        %v479 = vxor.u32 %v453, 2147483648
        %v480 = vxor.u32 %v458, 2147483648
        %v481 = vxor.u32 %v463, 2147483648
        %v482 = vmul.f32 %v466, 1.442695
        %v483 = vpow.pop %v482
        %v484 = vmul.f32 %v467, 1.442695
        %v485 = vpow.pop %v484
        %v486 = vmul.f32 %v468, 1.442695
        %v487 = vpow.pop %v486
        %v488 = vmul.f32 %v469, 1.442695
        %v489 = vpow.pop %v488
        %v490 = vmul.f32 %v470, 1.442695
        %v491 = vpow.pop %v490
        %v492 = vmul.f32 %v471, 1.442695
        %v493 = vpow.pop %v492
        %v494 = vmul.f32 %v472, 1.442695
        %v495 = vpow.pop %v494
        %v496 = vmul.f32 %v473, 1.442695
        %v497 = vpow.pop %v496
        %v498 = vmul.f32 %v474, 1.442695
        %v499 = vpow.pop %v498
        %v500 = vmul.f32 %v475, 1.442695
        %v501 = vpow.pop %v500
        %v502 = vmul.f32 %v476, 1.442695
        %v503 = vpow.pop %v502
        %v504 = vmul.f32 %v477, 1.442695
        %v505 = vpow.pop %v504
        %v506 = vmul.f32 %v478, 1.442695
        %v507 = vpow.pop %v506
        %v508 = vmul.f32 %v479, 1.442695
        %v509 = vpow.pop %v508
        %v510 = vmul.f32 %v480, 1.442695
        %v511 = vpow.pop %v510
        %v512 = vmul.f32 %v481, 1.442695
        %v513 = vpow.pop %v512
        %v514 = vadd.f32 %v483, 1.0
        %v515 = vadd.f32 %v485, 1.0
        %v516 = vadd.f32 %v487, 1.0
        %v517 = vadd.f32 %v489, 1.0
        %v518 = vadd.f32 %v491, 1.0
        %v519 = vadd.f32 %v493, 1.0
        %v520 = vadd.f32 %v495, 1.0
        %v521 = vadd.f32 %v497, 1.0
        %v522 = vadd.f32 %v499, 1.0
        %v523 = vadd.f32 %v501, 1.0
        %v524 = vadd.f32 %v503, 1.0
        %v525 = vadd.f32 %v505, 1.0
        %v526 = vadd.f32 %v507, 1.0
        %v527 = vadd.f32 %v509, 1.0
        %v528 = vadd.f32 %v511, 1.0
        %v529 = vadd.f32 %v513, 1.0
        %v530 = vrcp.pop %v514
        %v531 = vmul.f32 1.0, %v530
        %v532 = vrcp.pop %v515
        %v533 = vmul.f32 1.0, %v532
        %v534 = vrcp.pop %v516
        %v535 = vmul.f32 1.0, %v534
        %v536 = vrcp.pop %v517
        %v537 = vmul.f32 1.0, %v536
        %v538 = vrcp.pop %v518
        %v539 = vmul.f32 1.0, %v538
        %v540 = vrcp.pop %v519
        %v541 = vmul.f32 1.0, %v540
        %v542 = vrcp.pop %v520
        %v543 = vmul.f32 1.0, %v542
        %v544 = vrcp.pop %v521
        %v545 = vmul.f32 1.0, %v544
        %v546 = vrcp.pop %v522
        %v547 = vmul.f32 1.0, %v546
        %v548 = vrcp.pop %v523
        %v549 = vmul.f32 1.0, %v548
        %v550 = vrcp.pop %v524
        %v551 = vmul.f32 1.0, %v550
        %v552 = vrcp.pop %v525
        %v553 = vmul.f32 1.0, %v552
        %v554 = vrcp.pop %v526
        %v555 = vmul.f32 1.0, %v554
        %v556 = vrcp.pop %v527
        %v557 = vmul.f32 1.0, %v556
        %v558 = vrcp.pop %v528
        %v559 = vmul.f32 1.0, %v558
        %v560 = vrcp.pop %v529
        %v561 = vmul.f32 1.0, %v560
        %v562 = vld [vmem:[%s3] sm:$0x1]
        %v564 = vlaneseq
        %v565 = vshrl.u32 %v564, 7
        %v566 = vsub.s32 0, %v565
        %v567 = vrot.slane %v562, %v566
        %v569 = vmul.f32 %v531, %v567
        %v570 = vmul.f32 %v533, %v567
        %v571 = vmul.f32 %v535, %v567
        %v572 = vmul.f32 %v537, %v567
        %v573 = vmul.f32 %v539, %v567
        %v574 = vmul.f32 %v541, %v567
        %v575 = vmul.f32 %v543, %v567
        %v576 = vmul.f32 %v545, %v567
        %v577 = vmul.f32 %v547, %v567
        %v578 = vmul.f32 %v549, %v567
        %v579 = vmul.f32 %v551, %v567
        %v580 = vmul.f32 %v553, %v567
        %v581 = vmul.f32 %v555, %v567
        %v582 = vmul.f32 %v557, %v567
        %v583 = vmul.f32 %v559, %v567
        %v584 = vmul.f32 %v561, %v567
        %vm585 = vcmask 31744
        %v586 = vsel %vm585, %v569, 0.0
        %587 = vadd.xlane.f32.xlu0 %v586
        %v588 = vpop.xlane.xlu0 %587
        %v589 = vsel %vm585, %v570, 0.0
        %590 = vadd.xlane.f32.xlu0 %v589
        %v591 = vpop.xlane.xlu0 %590
        %v592 = vsel %vm585, %v571, 0.0
        %593 = vadd.xlane.f32.xlu0 %v592
        %v594 = vpop.xlane.xlu0 %593
        %v595 = vsel %vm585, %v572, 0.0
        %596 = vadd.xlane.f32.xlu0 %v595
        %v597 = vpop.xlane.xlu0 %596
        %v598 = vsel %vm585, %v573, 0.0
        %599 = vadd.xlane.f32.xlu0 %v598
        %v600 = vpop.xlane.xlu0 %599
        %v601 = vsel %vm585, %v574, 0.0
        %602 = vadd.xlane.f32.xlu0 %v601
        %v603 = vpop.xlane.xlu0 %602
        %v604 = vsel %vm585, %v575, 0.0
        %605 = vadd.xlane.f32.xlu0 %v604
        %v606 = vpop.xlane.xlu0 %605
        %v607 = vsel %vm585, %v576, 0.0
        %608 = vadd.xlane.f32.xlu0 %v607
        %v609 = vpop.xlane.xlu0 %608
        %v610 = vsel %vm585, %v577, 0.0
        %611 = vadd.xlane.f32.xlu0 %v610
        %v612 = vpop.xlane.xlu0 %611
        %v613 = vsel %vm585, %v578, 0.0
        %614 = vadd.xlane.f32.xlu0 %v613
        %v615 = vpop.xlane.xlu0 %614
        %v616 = vsel %vm585, %v579, 0.0
        %617 = vadd.xlane.f32.xlu0 %v616
        %v618 = vpop.xlane.xlu0 %617
        %v619 = vsel %vm585, %v580, 0.0
        %620 = vadd.xlane.f32.xlu0 %v619
        %v621 = vpop.xlane.xlu0 %620
        %v622 = vsel %vm585, %v581, 0.0
        %623 = vadd.xlane.f32.xlu0 %v622
        %v624 = vpop.xlane.xlu0 %623
        %v625 = vsel %vm585, %v582, 0.0
        %626 = vadd.xlane.f32.xlu0 %v625
        %v627 = vpop.xlane.xlu0 %626
        %v628 = vsel %vm585, %v583, 0.0
        %629 = vadd.xlane.f32.xlu0 %v628
        %v630 = vpop.xlane.xlu0 %629
        %v631 = vsel %vm585, %v584, 0.0
        %632 = vadd.xlane.f32.xlu0 %v631
        %v633 = vpop.xlane.xlu0 %632
        %s634 = sld [smem:[#allocation2]]
        %v635 = vstv %s634
        %v636 = vadd.f32 %v588, %v635
        %v637 = vadd.f32 %v591, %v635
        %v638 = vadd.f32 %v594, %v635
        %v639 = vadd.f32 %v597, %v635
        %v640 = vadd.f32 %v600, %v635
        %v641 = vadd.f32 %v603, %v635
        %v642 = vadd.f32 %v606, %v635
        %v643 = vadd.f32 %v609, %v635
        %v644 = vadd.f32 %v612, %v635
        %v645 = vadd.f32 %v615, %v635
        %v646 = vadd.f32 %v618, %v635
        %v647 = vadd.f32 %v621, %v635
        %v648 = vadd.f32 %v624, %v635
        %v649 = vadd.f32 %v627, %v635
        %v650 = vadd.f32 %v630, %v635
        %v651 = vadd.f32 %v633, %v635
        %v652 = vxor.u32 %v636, 2147483648
        %v653 = vxor.u32 %v637, 2147483648
        %v654 = vxor.u32 %v638, 2147483648
        %v655 = vxor.u32 %v639, 2147483648
        %v656 = vxor.u32 %v640, 2147483648
        %v657 = vxor.u32 %v641, 2147483648
        %v658 = vxor.u32 %v642, 2147483648
        %v659 = vxor.u32 %v643, 2147483648
        %v660 = vxor.u32 %v644, 2147483648
        %v661 = vxor.u32 %v645, 2147483648
        %v662 = vxor.u32 %v646, 2147483648
        %v663 = vxor.u32 %v647, 2147483648
        %v664 = vxor.u32 %v648, 2147483648
        %v665 = vxor.u32 %v649, 2147483648
        %v666 = vxor.u32 %v650, 2147483648
        %v667 = vxor.u32 %v651, 2147483648
        %v668 = vmul.f32 %v652, 1.442695
        %v669 = vpow.pop %v668
        %v670 = vmul.f32 %v653, 1.442695
        %v671 = vpow.pop %v670
        %v672 = vmul.f32 %v654, 1.442695
        %v673 = vpow.pop %v672
        %v674 = vmul.f32 %v655, 1.442695
        %v675 = vpow.pop %v674
        %v676 = vmul.f32 %v656, 1.442695
        %v677 = vpow.pop %v676
        %v678 = vmul.f32 %v657, 1.442695
        %v679 = vpow.pop %v678
        %v680 = vmul.f32 %v658, 1.442695
        %v681 = vpow.pop %v680
        %v682 = vmul.f32 %v659, 1.442695
        %v683 = vpow.pop %v682
        %v684 = vmul.f32 %v660, 1.442695
        %v685 = vpow.pop %v684
        %v686 = vmul.f32 %v661, 1.442695
        %v687 = vpow.pop %v686
        %v688 = vmul.f32 %v662, 1.442695
        %v689 = vpow.pop %v688
        %v690 = vmul.f32 %v663, 1.442695
        %v691 = vpow.pop %v690
        %v692 = vmul.f32 %v664, 1.442695
        %v693 = vpow.pop %v692
        %v694 = vmul.f32 %v665, 1.442695
        %v695 = vpow.pop %v694
        %v696 = vmul.f32 %v666, 1.442695
        %v697 = vpow.pop %v696
        %v698 = vmul.f32 %v667, 1.442695
        %v699 = vpow.pop %v698
        %v700 = vadd.f32 %v669, 1.0
        %v701 = vadd.f32 %v671, 1.0
        %v702 = vadd.f32 %v673, 1.0
        %v703 = vadd.f32 %v675, 1.0
        %v704 = vadd.f32 %v677, 1.0
        %v705 = vadd.f32 %v679, 1.0
        %v706 = vadd.f32 %v681, 1.0
        %v707 = vadd.f32 %v683, 1.0
        %v708 = vadd.f32 %v685, 1.0
        %v709 = vadd.f32 %v687, 1.0
        %v710 = vadd.f32 %v689, 1.0
        %v711 = vadd.f32 %v691, 1.0
        %v712 = vadd.f32 %v693, 1.0
        %v713 = vadd.f32 %v695, 1.0
        %v714 = vadd.f32 %v697, 1.0
        %v715 = vadd.f32 %v699, 1.0
        %v716 = vrcp.pop %v700
        %v717 = vmul.f32 1.0, %v716
        %v718 = vrcp.pop %v701
        %v719 = vmul.f32 1.0, %v718
        %v720 = vrcp.pop %v702
        %v721 = vmul.f32 1.0, %v720
        %v722 = vrcp.pop %v703
        %v723 = vmul.f32 1.0, %v722
        %v724 = vrcp.pop %v704
        %v725 = vmul.f32 1.0, %v724
        %v726 = vrcp.pop %v705
        %v727 = vmul.f32 1.0, %v726
        %v728 = vrcp.pop %v706
        %v729 = vmul.f32 1.0, %v728
        %v730 = vrcp.pop %v707
        %v731 = vmul.f32 1.0, %v730
        %v732 = vrcp.pop %v708
        %v733 = vmul.f32 1.0, %v732
        %v734 = vrcp.pop %v709
        %v735 = vmul.f32 1.0, %v734
        %v736 = vrcp.pop %v710
        %v737 = vmul.f32 1.0, %v736
        %v738 = vrcp.pop %v711
        %v739 = vmul.f32 1.0, %v738
        %v740 = vrcp.pop %v712
        %v741 = vmul.f32 1.0, %v740
        %v742 = vrcp.pop %v713
        %v743 = vmul.f32 1.0, %v742
        %v744 = vrcp.pop %v714
        %v745 = vmul.f32 1.0, %v744
        %v746 = vrcp.pop %v715
        %v747 = vmul.f32 1.0, %v746
        %vm748 = vcmask 7168
        %749 = vst.msk [vmem:[%s227] sm:$0xff] %vm748, %v717
        %750 = vst.msk [vmem:[%s227 + $0x8] sm:$0xff] %vm748, %v719
        %751 = vst.msk [vmem:[%s227 + $0x10] sm:$0xff] %vm748, %v721
        %752 = vst.msk [vmem:[%s227 + $0x18] sm:$0xff] %vm748, %v723
        %753 = vst.msk [vmem:[%s227 + $0x20] sm:$0xff] %vm748, %v725
        %754 = vst.msk [vmem:[%s227 + $0x28] sm:$0xff] %vm748, %v727
        %755 = vst.msk [vmem:[%s227 + $0x30] sm:$0xff] %vm748, %v729
        %756 = vst.msk [vmem:[%s227 + $0x38] sm:$0xff] %vm748, %v731
        %757 = vst.msk [vmem:[%s227 + $0x40] sm:$0xff] %vm748, %v733
        %758 = vst.msk [vmem:[%s227 + $0x48] sm:$0xff] %vm748, %v735
        %759 = vst.msk [vmem:[%s227 + $0x50] sm:$0xff] %vm748, %v737
        %760 = vst.msk [vmem:[%s227 + $0x58] sm:$0xff] %vm748, %v739
        %761 = vst.msk [vmem:[%s227 + $0x60] sm:$0xff] %vm748, %v741
        %762 = vst.msk [vmem:[%s227 + $0x68] sm:$0xff] %vm748, %v743
        %763 = vst.msk [vmem:[%s227 + $0x70] sm:$0xff] %vm748, %v745
        %764 = vst.msk [vmem:[%s227 + $0x78] sm:$0xff] %vm748, %v747
        %s765 = sand.u32 %s135, 1
        %s766 = sand.u32 %s135, 1
        %s767 = smul.addr %s766, 128
        %s768 = scalar_lea.vmem [#allocation3], %s767
        // Predicated region
        $region41: #{tpu_custom_call.1} parent=39 // pred_check
          %p769 = pneg %p145
        $region42: #{tpu_custom_call.1} parent=39 // pred_check_branch
          %771 = sbr.rel (%p769) target = $region44
        $region43: #{tpu_custom_call.1} parent=39 // pred_region
          %s772 = smul.u32 16, %s17
          %s773 = ssub.s32 38, %s772
          %p774 = scmp.lt.s32.totalorder %s773, 16
          %s775 = scalar_select %p774, %s773, 16
          %s776 = smul.u32 128, %s775
          %p777 = scmp.ne.s32.totalorder 0, %s776
          %s778 = smul.addr %s772, 8
          %s779 = scalar_lea.vmem %s5, %s778
          // Predicated region
          $region45: #{tpu_custom_call.1} parent=43 // pred_check
            %p780 = pneg %p777
          $region46: #{tpu_custom_call.1} parent=43 // pred_check_branch
            %782 = sbr.rel (%p780) target = $region48
          $region47: #{tpu_custom_call.1} parent=43 // pred_region
            // Predicated region
            $region49: #{tpu_custom_call.1} parent=47 // pred_check
              _
            $region50: #{tpu_custom_call.1} parent=47 // pred_check_branch
              %784 = sbr.rel (0) target = $region52
            $region51: #{tpu_custom_call.1} parent=47 // pred_region
              // Predicated region
              $region71: #{tpu_custom_call.1} parent=51 // pred_check
                _
              $region72: #{tpu_custom_call.1} parent=51 // pred_check_branch
                %863 = sbr.rel (0) target = $region74
              $region73: #{tpu_custom_call.1} parent=51 // pred_region
                %s864 = sshrl.u32 %s775, 4
                // While loop
                $region75: #{tpu_custom_call.1} parent=73 // loop_pre_header
                  _
                $region76: #{tpu_custom_call.1} parent=73 // loop_header
                  %s866 = sphi 0, %s868
                  %p867 = scmp.ge.s32.totalorder %s866, %s864
                  %s871 = sphi 0, %s908
                  %s872 = sphi %s768, %s911
                  %s873 = sphi %s779, %s912
                $region77: #{tpu_custom_call.1} parent=73 // loop_header_branch
                  %870 = sbr.rel (%p867) target = $region81
                $region78: #{tpu_custom_call.1} parent=73 // loop_body
                  %v874 = vld [vmem:[%s872] sm:$0xff]
                  %875 = vst [vmem:[%s873] sm:$0xff] %v874
                  %v876 = vld [vmem:[%s872 + $0x8] sm:$0xff]
                  %877 = vst [vmem:[%s873 + $0x8] sm:$0xff] %v876
                  %v878 = vld [vmem:[%s872 + $0x10] sm:$0xff]
                  %879 = vst [vmem:[%s873 + $0x10] sm:$0xff] %v878
                  %v880 = vld [vmem:[%s872 + $0x18] sm:$0xff]
                  %881 = vst [vmem:[%s873 + $0x18] sm:$0xff] %v880
                  %v882 = vld [vmem:[%s872 + $0x20] sm:$0xff]
                  %883 = vst [vmem:[%s873 + $0x20] sm:$0xff] %v882
                  %v884 = vld [vmem:[%s872 + $0x28] sm:$0xff]
                  %885 = vst [vmem:[%s873 + $0x28] sm:$0xff] %v884
                  %v886 = vld [vmem:[%s872 + $0x30] sm:$0xff]
                  %887 = vst [vmem:[%s873 + $0x30] sm:$0xff] %v886
                  %v888 = vld [vmem:[%s872 + $0x38] sm:$0xff]
                  %889 = vst [vmem:[%s873 + $0x38] sm:$0xff] %v888
                  %v890 = vld [vmem:[%s872 + $0x40] sm:$0xff]
                  %891 = vst [vmem:[%s873 + $0x40] sm:$0xff] %v890
                  %v892 = vld [vmem:[%s872 + $0x48] sm:$0xff]
                  %893 = vst [vmem:[%s873 + $0x48] sm:$0xff] %v892
                  %v894 = vld [vmem:[%s872 + $0x50] sm:$0xff]
                  %895 = vst [vmem:[%s873 + $0x50] sm:$0xff] %v894
                  %v896 = vld [vmem:[%s872 + $0x58] sm:$0xff]
                  %897 = vst [vmem:[%s873 + $0x58] sm:$0xff] %v896
                  %v898 = vld [vmem:[%s872 + $0x60] sm:$0xff]
                  %899 = vst [vmem:[%s873 + $0x60] sm:$0xff] %v898
                  %v900 = vld [vmem:[%s872 + $0x68] sm:$0xff]
                  %901 = vst [vmem:[%s873 + $0x68] sm:$0xff] %v900
                  %v902 = vld [vmem:[%s872 + $0x70] sm:$0xff]
                  %903 = vst [vmem:[%s873 + $0x70] sm:$0xff] %v902
                  %v904 = vld [vmem:[%s872 + $0x78] sm:$0xff]
                  %905 = vst [vmem:[%s873 + $0x78] sm:$0xff] %v904
                  %s906 = sadd.s32 1, %s871
                  %p907 = scmp.ge.s32.totalorder %s906, %s864
                  %s908 = scalar_select %p907, 0, %s906
                  %s909 = smul.u32 %s908, 128
                  %s910 = smul.u32 %s908, 128
                  %s911 = scalar_lea.vmem %s768, %s909 [#allocation3]
                  %s912 = scalar_lea.vmem %s779, %s910
                $region79: #{tpu_custom_call.1} parent=73 // loop_footer
                  %s868 = sadd.s32 %s866, 1
                $region80: #{tpu_custom_call.1} parent=73 // loop_footer_branch
                  %865 = sbr.rel target = $region76
                $region81: #{tpu_custom_call.1} parent=73 // loop_exit
                  _
                %s913 = sshrl.u32 %s775, 4
                %s914 = sand.u32 %s775, 15
                %s915 = smul.u32 %s913, 16
                %s916 = smul.u32 8, %s915
                %s917 = scalar_lea.vmem %s768, %s916 [#allocation3]
                %s918 = smul.u32 8, %s915
                %s919 = scalar_lea.vmem %s779, %s918
                // While loop
                $region82: #{tpu_custom_call.1} parent=73 // loop_pre_header
                  _
                $region83: #{tpu_custom_call.1} parent=73 // loop_header
                  %s921 = sphi 0, %s923
                  %p922 = scmp.ge.s32.totalorder %s921, %s914
                  %s926 = sphi 0, %s933
                  %s927 = sphi %s917, %s936
                  %s928 = sphi %s919, %s937
                $region84: #{tpu_custom_call.1} parent=73 // loop_header_branch
                  %925 = sbr.rel (%p922) target = $region88
                $region85: #{tpu_custom_call.1} parent=73 // loop_body
                  %v929 = vld [vmem:[%s927] sm:$0xff]
                  %930 = vst [vmem:[%s928] sm:$0xff] %v929
                  %s931 = sadd.s32 1, %s926
                  %p932 = scmp.ge.s32.totalorder %s931, %s914
                  %s933 = scalar_select %p932, 0, %s931
                  %s934 = smul.u32 %s933, 8
                  %s935 = smul.u32 %s933, 8
                  %s936 = scalar_lea.vmem %s917, %s934 [#allocation3]
                  %s937 = scalar_lea.vmem %s919, %s935
                $region86: #{tpu_custom_call.1} parent=73 // loop_footer
                  %s923 = sadd.s32 %s921, 1
                $region87: #{tpu_custom_call.1} parent=73 // loop_footer_branch
                  %920 = sbr.rel target = $region83
                $region88: #{tpu_custom_call.1} parent=73 // loop_exit
                  _
              $region74: #{tpu_custom_call.1} parent=51 // pred_fallthru
                _
              // Predicated region
              $region89: #{tpu_custom_call.1} parent=51 // pred_check
                _
              $region90: #{tpu_custom_call.1} parent=51 // pred_check_branch
                %939 = sbr.rel target = $region92
              $region91: #{tpu_custom_call.1} parent=51 // pred_region
                _
              $region92: #{tpu_custom_call.1} parent=51 // pred_fallthru
                _
            $region52: #{tpu_custom_call.1} parent=47 // pred_fallthru
              _
            // Predicated region
            $region53: #{tpu_custom_call.1} parent=47 // pred_check
              _
            $region54: #{tpu_custom_call.1} parent=47 // pred_check_branch
              %786 = sbr.rel target = $region56
            $region55: #{tpu_custom_call.1} parent=47 // pred_region
              %s788 = sshrl.u32 %s775, 4
              // While loop
              $region57: #{tpu_custom_call.1} parent=55 // loop_pre_header
                _
              $region58: #{tpu_custom_call.1} parent=55 // loop_header
                %s790 = sphi 0, %s792
                %p791 = scmp.ge.s32.totalorder %s790, %s788
                %s795 = sphi 0, %s832
                %s796 = sphi %s768, %s835
                %s797 = sphi %s779, %s836
              $region59: #{tpu_custom_call.1} parent=55 // loop_header_branch
                %794 = sbr.rel (%p791) target = $region63
              $region60: #{tpu_custom_call.1} parent=55 // loop_body
                %v798 = vld [vmem:[%s796] sm:$0xff]
                %799 = vst [vmem:[%s797] sm:$0xff] %v798
                %v800 = vld [vmem:[%s796 + $0x8] sm:$0xff]
                %801 = vst [vmem:[%s797 + $0x8] sm:$0xff] %v800
                %v802 = vld [vmem:[%s796 + $0x10] sm:$0xff]
                %803 = vst [vmem:[%s797 + $0x10] sm:$0xff] %v802
                %v804 = vld [vmem:[%s796 + $0x18] sm:$0xff]
                %805 = vst [vmem:[%s797 + $0x18] sm:$0xff] %v804
                %v806 = vld [vmem:[%s796 + $0x20] sm:$0xff]
                %807 = vst [vmem:[%s797 + $0x20] sm:$0xff] %v806
                %v808 = vld [vmem:[%s796 + $0x28] sm:$0xff]
                %809 = vst [vmem:[%s797 + $0x28] sm:$0xff] %v808
                %v810 = vld [vmem:[%s796 + $0x30] sm:$0xff]
                %811 = vst [vmem:[%s797 + $0x30] sm:$0xff] %v810
                %v812 = vld [vmem:[%s796 + $0x38] sm:$0xff]
                %813 = vst [vmem:[%s797 + $0x38] sm:$0xff] %v812
                %v814 = vld [vmem:[%s796 + $0x40] sm:$0xff]
                %815 = vst [vmem:[%s797 + $0x40] sm:$0xff] %v814
                %v816 = vld [vmem:[%s796 + $0x48] sm:$0xff]
                %817 = vst [vmem:[%s797 + $0x48] sm:$0xff] %v816
                %v818 = vld [vmem:[%s796 + $0x50] sm:$0xff]
                %819 = vst [vmem:[%s797 + $0x50] sm:$0xff] %v818
                %v820 = vld [vmem:[%s796 + $0x58] sm:$0xff]
                %821 = vst [vmem:[%s797 + $0x58] sm:$0xff] %v820
                %v822 = vld [vmem:[%s796 + $0x60] sm:$0xff]
                %823 = vst [vmem:[%s797 + $0x60] sm:$0xff] %v822
                %v824 = vld [vmem:[%s796 + $0x68] sm:$0xff]
                %825 = vst [vmem:[%s797 + $0x68] sm:$0xff] %v824
                %v826 = vld [vmem:[%s796 + $0x70] sm:$0xff]
                %827 = vst [vmem:[%s797 + $0x70] sm:$0xff] %v826
                %v828 = vld [vmem:[%s796 + $0x78] sm:$0xff]
                %829 = vst [vmem:[%s797 + $0x78] sm:$0xff] %v828
                %s830 = sadd.s32 1, %s795
                %p831 = scmp.ge.s32.totalorder %s830, %s788
                %s832 = scalar_select %p831, 0, %s830
                %s833 = smul.u32 %s832, 128
                %s834 = smul.u32 %s832, 128
                %s835 = scalar_lea.vmem %s768, %s833 [#allocation3]
                %s836 = scalar_lea.vmem %s779, %s834
              $region61: #{tpu_custom_call.1} parent=55 // loop_footer
                %s792 = sadd.s32 %s790, 1
              $region62: #{tpu_custom_call.1} parent=55 // loop_footer_branch
                %789 = sbr.rel target = $region58
              $region63: #{tpu_custom_call.1} parent=55 // loop_exit
                _
              %s837 = sshrl.u32 %s775, 4
              %s838 = sand.u32 %s775, 15
              %s839 = smul.u32 %s837, 16
              %s840 = smul.u32 8, %s839
              %s841 = scalar_lea.vmem %s768, %s840 [#allocation3]
              %s842 = smul.u32 8, %s839
              %s843 = scalar_lea.vmem %s779, %s842
              // While loop
              $region64: #{tpu_custom_call.1} parent=55 // loop_pre_header
                _
              $region65: #{tpu_custom_call.1} parent=55 // loop_header
                %s845 = sphi 0, %s847
                %p846 = scmp.ge.s32.totalorder %s845, %s838
                %s850 = sphi 0, %s857
                %s851 = sphi %s841, %s860
                %s852 = sphi %s843, %s861
              $region66: #{tpu_custom_call.1} parent=55 // loop_header_branch
                %849 = sbr.rel (%p846) target = $region70
              $region67: #{tpu_custom_call.1} parent=55 // loop_body
                %v853 = vld [vmem:[%s851] sm:$0xff]
                %854 = vst [vmem:[%s852] sm:$0xff] %v853
                %s855 = sadd.s32 1, %s850
                %p856 = scmp.ge.s32.totalorder %s855, %s838
                %s857 = scalar_select %p856, 0, %s855
                %s858 = smul.u32 %s857, 8
                %s859 = smul.u32 %s857, 8
                %s860 = scalar_lea.vmem %s841, %s858 [#allocation3]
                %s861 = scalar_lea.vmem %s843, %s859
              $region68: #{tpu_custom_call.1} parent=55 // loop_footer
                %s847 = sadd.s32 %s845, 1
              $region69: #{tpu_custom_call.1} parent=55 // loop_footer_branch
                %844 = sbr.rel target = $region65
              $region70: #{tpu_custom_call.1} parent=55 // loop_exit
                _
            $region56: #{tpu_custom_call.1} parent=47 // pred_fallthru
              _
          $region48: #{tpu_custom_call.1} parent=43 // pred_fallthru
            _
          %940 = vnop
        $region44: #{tpu_custom_call.1} parent=39 // pred_fallthru
          _
      $region40: #{tpu_custom_call.1} parent=5 // pred_fallthru
        _
      %p941 = scmp.le.s32.totalorder 2, %s12
      // Predicated region
      $region93: #{tpu_custom_call.1} parent=5 // pred_check
        %p942 = pneg %p941
      $region94: #{tpu_custom_call.1} parent=5 // pred_check_branch
        %944 = sbr.rel (%p942) target = $region96
      $region95: #{tpu_custom_call.1} parent=5 // pred_region
        %s945 = ssub.s32 %s12, 2
        // Predicated region
        $region97: #{tpu_custom_call.1} parent=95 // pred_check
          %p946 = pneg %p151
        $region98: #{tpu_custom_call.1} parent=95 // pred_check_branch
          %948 = sbr.rel (%p946) target = $region100
        $region99: #{tpu_custom_call.1} parent=95 // pred_region
          %s949 = sand.u32 %s136, 1
          %s950 = sand.u32 %s136, 1
          %s951 = smul.addr %s950, 128
          %s952 = scalar_lea.vmem [#allocation3], %s951
        $region100: #{tpu_custom_call.1} parent=95 // pred_fallthru
          _
      $region96: #{tpu_custom_call.1} parent=5 // pred_fallthru
        _
    $region6: #{tpu_custom_call.1} parent=1 // loop_footer
      %s16 = sadd.s32 1, %s12
    $region7: #{tpu_custom_call.1} parent=1 // loop_footer_branch
      %11 = sbr.rel target = $region3
    $region8: #{tpu_custom_call.1} parent=1 // loop_exit
      _

</llo_original>
